<compile_context>
chip_gen: v5e
topology: v5e:2x2
jax: 0.10.0
libtpu: 0.0.40
codegen_flags: <defaults>
</compile_context>

<pallas_src>
import jax
import jax.numpy as jnp
from jax import lax
from jax.experimental import pallas as pl
from jax.experimental.pallas import tpu as pltpu

NEG_SLOPE = 0.01  # torch.nn.LeakyReLU default
BN_EPS = 1e-5     # torch.nn.BatchNorm2d default


def _round_up(x, m):
    return (x + m - 1) // m * m


def convbl_kernel(w_ref, p_ref, scale_ref, bias_ref, o_ref):
    """(Cout_pad, K) @ (K, TM) GEMM + folded-BN + LeakyReLU epilogue.

    w_ref:     (Cout_pad, K)   bf16 conv weights, (kh,kw,cin) flattened on K
    p_ref:     (K, TM)         bf16 transposed im2col patches (M on lanes)
    scale_ref: (Cout_pad, 1)   f32 folded BN scale
    bias_ref:  (Cout_pad, 1)   f32 folded BN bias
    o_ref:     (Cout_pad, TM)  f32 output tile (lane-dense, no Cout pad waste)
    """
    acc = jnp.dot(w_ref[...], p_ref[...], preferred_element_type=jnp.float32)
    y = acc * scale_ref[...] + bias_ref[...]
    o_ref[...] = jnp.where(y > 0.0, y, NEG_SLOPE * y).astype(o_ref.dtype)


def convbl_forward(x_nchw, weight_oihw, gamma, beta, running_mean, running_var,
                   *, tm=1024):
    """Pallas ConvBL forward. x_nchw: (N, Cin, H, W) f32 -> (N, Cout, H, W) f32."""
    N, Cin, H, W = x_nchw.shape
    Cout = weight_oihw.shape[0]
    KH, KW = weight_oihw.shape[2], weight_oihw.shape[3]
    assert (KH, KW) == (3, 3), "kernel implements ConvBL defaults (3x3, s=1, p=1)"

    M = N * H * W
    K = 9 * Cin
    Cout_pad = _round_up(Cout, 8)          # sublane granularity only

    # M tile (lane axis of the output). Keep >= 2 grid steps when possible so
    # v7x's two TensorCores both get work; TM stays a multiple of 128.
    TM = _round_up(max(128, min(tm, 4096)), 128)
    while TM > 128 and _round_up(M, TM) // TM < 2:
        TM = max(128, _round_up(TM // 2, 128))
    M_pad = _round_up(M, TM)

    # --- wrapper glue (plain JAX): layout + zero pad + transposed im2col ----
    x_cnhw = jnp.transpose(x_nchw, (1, 0, 2, 3))                    # (Cin,N,H,W)
    x_pad = jnp.pad(x_cnhw, ((0, 0), (0, 0), (1, 1), (1, 1)))       # zero pad
    taps = [x_pad[:, :, kh:kh + H, kw:kw + W].reshape(Cin, M)
            for kh in range(3) for kw in range(3)]
    patches_t = jnp.concatenate(taps, axis=0).astype(jnp.bfloat16)  # (K, M)
    patches_t = jnp.pad(patches_t, ((0, 0), (0, M_pad - M)))        # (K, M_pad)

    # Conv2d weight (Cout, Cin, 3, 3) -> (Cout, kh, kw, Cin) -> (Cout, 9*Cin)
    w = jnp.transpose(weight_oihw, (0, 2, 3, 1)).reshape(Cout, K).astype(jnp.bfloat16)
    w = jnp.pad(w, ((0, Cout_pad - Cout), (0, 0)))                  # (Cout_pad, K)

    # Folded inference-mode BatchNorm.
    scale = gamma / jnp.sqrt(running_var + BN_EPS)                  # (Cout,)
    bias = beta - running_mean * scale                              # (Cout,)
    scale_p = jnp.pad(scale, (0, Cout_pad - Cout)).reshape(Cout_pad, 1).astype(jnp.float32)
    bias_p = jnp.pad(bias, (0, Cout_pad - Cout)).reshape(Cout_pad, 1).astype(jnp.float32)

    # Explicit VMEM budget (double-buffered blocks + headroom), 64 MiB cap (v7x).
    block_bytes = (Cout_pad * K * 2) + (K * TM * 2) + 2 * (Cout_pad * 4) + (Cout_pad * TM * 4)
    vmem_limit = int(min(64 << 20, max(32 << 20, 2 * block_bytes + (4 << 20))))

    cost = pl.CostEstimate(
        flops=2 * M * K * Cout,
        transcendentals=0,
        bytes_accessed=int(K * M_pad * 2 + Cout_pad * K * 2
                           + 2 * Cout_pad * 4 + Cout_pad * M_pad * 4),
    )

    # --- Pallas call: lane-dense tiled GEMM + epilogue -----------------------
    out_flat = pl.pallas_call(
        convbl_kernel,
        out_shape=jax.ShapeDtypeStruct((Cout_pad, M_pad), jnp.float32),
        grid_spec=pltpu.PrefetchScalarGridSpec(
            num_scalar_prefetch=0,
            grid=(M_pad // TM,),
            in_specs=[
                pl.BlockSpec((Cout_pad, K), lambda i: (0, 0)),
                pl.BlockSpec((K, TM), lambda i: (0, i)),
                pl.BlockSpec((Cout_pad, 1), lambda i: (0, 0)),
                pl.BlockSpec((Cout_pad, 1), lambda i: (0, 0)),
            ],
            out_specs=pl.BlockSpec((Cout_pad, TM), lambda i: (0, i)),
        ),
        compiler_params=pltpu.CompilerParams(
            dimension_semantics=("parallel",),
            vmem_limit_bytes=vmem_limit),
        cost_estimate=cost,
    )(w, patches_t, scale_p, bias_p)

    out = out_flat[:Cout, :M].reshape(Cout, N, H, W)
    return jnp.transpose(out, (1, 0, 2, 3))                          # NCHW


def reference_forward(x_nchw, weight_oihw, gamma, beta, running_mean, running_var):
    """Pure-JAX f32 reference (lax conv) for correctness checking."""
    y = lax.conv_general_dilated(
        x_nchw, weight_oihw,
        window_strides=(1, 1), padding=((1, 1), (1, 1)),
        dimension_numbers=("NCHW", "OIHW", "NCHW"))
    scale = gamma / jnp.sqrt(running_var + BN_EPS)
    bias = beta - running_mean * scale
    y = y * scale[None, :, None, None] + bias[None, :, None, None]
    return jnp.where(y > 0, y, NEG_SLOPE * y)


if __name__ == "__main__":
    key = jax.random.PRNGKey(0)
    k_x, k_w, k_g, k_b, k_m, k_v = jax.random.split(key, 6)

    N, Cin, Cout, H, W = 2, 4, 8, 16, 16

    x = jax.random.normal(k_x, (N, Cin, H, W), dtype=jnp.float32)
    # Conv2d weight (Cout, Cin, 3, 3), no bias (bias=False default in ConvBL).
    weight = jax.random.normal(k_w, (Cout, Cin, 3, 3), dtype=jnp.float32) * 0.1
    # BatchNorm2d params / running stats (deterministic, nontrivial).
    gamma = 1.0 + 0.1 * jax.random.normal(k_g, (Cout,), dtype=jnp.float32)
    beta = 0.1 * jax.random.normal(k_b, (Cout,), dtype=jnp.float32)
    running_mean = 0.1 * jax.random.normal(k_m, (Cout,), dtype=jnp.float32)
    running_var = jnp.abs(jax.random.normal(k_v, (Cout,), dtype=jnp.float32)) + 0.5

    out = convbl_forward(x, weight, gamma, beta, running_mean, running_var)
    out = jax.block_until_ready(out)

    ref = reference_forward(x, weight, gamma, beta, running_mean, running_var)
    assert out.shape == (N, Cout, H, W)
    # bf16 matmul inputs with f32 accumulation -> slightly looser tolerance.
    assert jnp.allclose(out, ref, rtol=2e-2, atol=2e-2), "mismatch vs reference"

    print("KERNEL_OK")
</pallas_src>

<mosaic_0001>
module attributes {stable_mosaic.version = 11 : i64} {
  func.func @convbl_kernel(%arg0: i32, %arg1: memref<8x36xbf16, #tpu.memory_space<vmem>>, %arg2: memref<36x256xbf16, #tpu.memory_space<vmem>>, %arg3: memref<8x1xf32, #tpu.memory_space<vmem>>, %arg4: memref<8x1xf32, #tpu.memory_space<vmem>>, %arg5: memref<8x256xf32, #tpu.memory_space<vmem>>) attributes {dimension_semantics = [#tpu.dimension_semantics<parallel>], iteration_bounds = array<i64: 2>, scalar_prefetch = 0 : i64, scratch_operands = 0 : i64, tpu.core_type = #tpu.core_type<tc>, window_params = [{pipeline_mode = #tpu.pipeline_mode<synchronous>, transform_indices = @transform_0, window_bounds = array<i64: 8, 36>}, {transform_indices = @transform_1, window_bounds = array<i64: 36, 256>}, {pipeline_mode = #tpu.pipeline_mode<synchronous>, transform_indices = @transform_2, window_bounds = array<i64: 8, 1>}, {pipeline_mode = #tpu.pipeline_mode<synchronous>, transform_indices = @transform_3, window_bounds = array<i64: 8, 1>}, {transform_indices = @transform_4, window_bounds = array<i64: 8, 256>}]} {
    %c0 = arith.constant 0 : index
    %c0_0 = arith.constant 0 : index
    %0 = vector.load %arg1[%c0, %c0_0] : memref<8x36xbf16, #tpu.memory_space<vmem>>, vector<8x36xbf16>
    %c0_1 = arith.constant 0 : index
    %c0_2 = arith.constant 0 : index
    %1 = vector.load %arg2[%c0_1, %c0_2] : memref<36x256xbf16, #tpu.memory_space<vmem>>, vector<36x256xbf16>
    %cst = arith.constant dense<0.000000e+00> : vector<8x256xf32>
    %2 = tpu.matmul %0, %1, %cst {dimension_numbers = #tpu.dot_dimension_numbers<[1], [0], [0], [1], [0, 0, 1, 1], [], []>} : vector<8x36xbf16>, vector<36x256xbf16>, vector<8x256xf32> -> vector<8x256xf32>
    %c0_3 = arith.constant 0 : index
    %c0_4 = arith.constant 0 : index
    %3 = vector.load %arg3[%c0_3, %c0_4] : memref<8x1xf32, #tpu.memory_space<vmem>>, vector<8x1xf32>
    %4 = vector.broadcast %3 : vector<8x1xf32> to vector<8x256xf32>
    %5 = arith.mulf %2, %4 : vector<8x256xf32>
    %c0_5 = arith.constant 0 : index
    %c0_6 = arith.constant 0 : index
    %6 = vector.load %arg4[%c0_5, %c0_6] : memref<8x1xf32, #tpu.memory_space<vmem>>, vector<8x1xf32>
    %7 = vector.broadcast %6 : vector<8x1xf32> to vector<8x256xf32>
    %8 = arith.addf %5, %7 : vector<8x256xf32>
    %cst_7 = arith.constant 0.000000e+00 : f32
    %9 = vector.broadcast %cst_7 : f32 to vector<8x256xf32>
    %10 = arith.cmpf ogt, %8, %9 : vector<8x256xf32>
    %cst_8 = arith.constant 0.00999999977 : f32
    %11 = vector.broadcast %cst_8 : f32 to vector<8x256xf32>
    %12 = arith.mulf %11, %8 : vector<8x256xf32>
    %13 = arith.select %10, %8, %12 : vector<8x256xi1>, vector<8x256xf32>
    %c0_9 = arith.constant 0 : index
    %c0_10 = arith.constant 0 : index
    %14 = vector.load %arg5[%c0_9, %c0_10] : memref<8x256xf32, #tpu.memory_space<vmem>>, vector<8x256xf32>
    tpu.vector_store %arg5[%c0_9, %c0_10], %13 {strides = array<i32>} : memref<8x256xf32, #tpu.memory_space<vmem>>, vector<8x256xf32>,
    return
  }
  func.func @transform_0(%arg0: i32) -> (i32, i32) {
    %c0_i32 = arith.constant 0 : i32
    %c0_i32_0 = arith.constant 0 : i32
    %c0_i32_1 = arith.constant 0 : i32
    return %c0_i32, %c0_i32_0 : i32, i32
  }
  func.func @transform_1(%arg0: i32) -> (i32, i32) {
    %c0_i32 = arith.constant 0 : i32
    %c0_i32_0 = arith.constant 0 : i32
    return %c0_i32, %arg0 : i32, i32
  }
  func.func @transform_2(%arg0: i32) -> (i32, i32) {
    %c0_i32 = arith.constant 0 : i32
    %c0_i32_0 = arith.constant 0 : i32
    %c0_i32_1 = arith.constant 0 : i32
    return %c0_i32, %c0_i32_0 : i32, i32
  }
  func.func @transform_3(%arg0: i32) -> (i32, i32) {
    %c0_i32 = arith.constant 0 : i32
    %c0_i32_0 = arith.constant 0 : i32
    %c0_i32_1 = arith.constant 0 : i32
    return %c0_i32, %c0_i32_0 : i32, i32
  }
  func.func @transform_4(%arg0: i32) -> (i32, i32) {
    %c0_i32 = arith.constant 0 : i32
    %c0_i32_0 = arith.constant 0 : i32
    return %c0_i32, %arg0 : i32, i32
  }
}

</mosaic_0001>

<llo_original>
// kernel: tpu_custom_call.1
$region0: #{tpu_custom_call.1}
  #allocation0 [shape = 'u32[]', space=smem, size = 0x4, offset = 0x4, fixed_abs, tag = 'smem constant byte address 0x4 - core index']
  #allocation1 [shape = 'u32[72,128]{1,0:T(1,128)}', space=vmem, size = 0x9000, scoped, tag = 'internal scratch']
  %s0 = inlined_call_operand.vmem [shape: bf16[8,36], index: 0, kind: input, shape index: {}]
  %s1 = inlined_call_operand.hbm [shape: bf16[36,512], index: 1, kind: input, shape index: {}]
  %s2 = inlined_call_operand.vmem [shape: f32[8,1], index: 2, kind: input, shape index: {}]
  %s3 = inlined_call_operand.vmem [shape: f32[8,1], index: 3, kind: input, shape index: {}]
  %s4 = inlined_call_operand.hbm [shape: f32[8,512], index: 4, kind: output, shape index: {}]
  %s5 = sld [smem:[#allocation0]]
  $region53: #{tpu_custom_call.1} parent=0
    _
  %s7 = ssub.s32 1, %s5
  %s8 = scalar_select 0, %s7, %s5
  $region1: #{tpu_custom_call.1} parent=0
    #allocation2 [shape = 'u8[40960]{0}', space=vmem, size = 0xa000, scoped, tag = 'input window, operand 1']
    #allocation3 [shape = 's32[2]{0}', space=sflag, size = 0x8, scoped, tag = 'scoped memory for tpu_custom_call.1']
    #allocation4 [shape = 's32[2]{0}', space=sflag, size = 0x8, scoped, tag = 'scoped memory for tpu_custom_call.1']
    #allocation5 [shape = 'u8[16384]{0}', space=vmem, size = 0x4000, scoped, tag = 'output window, operand 0']
    %9 = vsyncpa [#allocation3], 0
    %s10 = scalar_lea.sflag [#allocation3], 1
    %11 = vsyncpa %s10, 0
    %12 = vsyncpa [#allocation4], 0
    %s13 = scalar_lea.sflag [#allocation4], 1
    %14 = vsyncpa %s13, 0
    loop: start=0, step=1, limit=4
    $region2: #{tpu_custom_call.1} parent=1 // loop_pre_header
      _
    $region3: #{tpu_custom_call.1} parent=1 // loop_header
      %s16 = sphi 0, %s20
      %p17 = scmp.ge.s32.totalorder %s16, 4
      %s24 = sphi 0, %s24
      %s26 = sphi 0, %s24
      %s27 = sphi 0, %s26
      %s41 = sphi 0, %s27
      %s47 = sphi 0, %s49
      %s50 = sphi 0, %s47
      %s51 = sphi 0, %s50
      %s67 = sphi 0, %s51
      %s71 = sphi 0, %s71
      %s73 = sphi 0, %s71
      %s74 = sphi 0, %s73
      %s88 = sphi 0, %s74
      %s92 = sphi 0, %s92
      %s94 = sphi 0, %s92
      %s95 = sphi 0, %s94
      %s109 = sphi 0, %s95
      %s115 = sphi 0, %s117
      %s118 = sphi 0, %s115
      %s119 = sphi 0, %s118
      %s135 = sphi 0, %s119
    $region4: #{tpu_custom_call.1} parent=1 // loop_header_branch
      %19 = sbr.rel (%p17) target = $region8
    $region5: #{tpu_custom_call.1} parent=1 // loop_body
      %s21 = ssub.s32 %s16, 1
      %s22 = ssub.s32 %s16, 2
      %s23 = sadd.s32 %s16, 1
      %s25 = sadd.s32 %s24, 1
      %p28 = scmp.eq.s32.totalorder %s16, 1
      %p29 = scmp.ne.s32.totalorder %s24, %s26
      %p30 = scmp.eq.s32.totalorder %s16, 0
      %p31 = por %p29, %p30
      %p32 = scmp.ne.s32.totalorder %s24, %s26
      %p33 = scmp.eq.s32.totalorder %s21, 1
      %p34 = por %p32, %p33
      %p35 = scmp.ne.s32.totalorder %s26, %s27
      %p36 = scmp.eq.s32.totalorder %s21, 0
      %p37 = por %p35, %p36
      %p38 = scmp.ne.s32.totalorder %s26, %s27
      %p39 = scmp.eq.s32.totalorder %s22, 1
      %p40 = por %p38, %p39
      %p42 = scmp.ne.s32.totalorder %s27, %s41
      %p43 = scmp.eq.s32.totalorder %s22, 0
      %p44 = por %p42, %p43
      %s45 = ssub.s32 %s16, %s23
      %p46 = scmp.eq.s32.totalorder %s45, 0
      %s48 = sadd.s32 %s47, 1
      %s49 = scalar_select %p46, %s47, %s48
      %p52 = pneg %p46
      %p53 = scmp.eq.s32.totalorder %s16, 1
      %p54 = por %p52, %p53
      %p55 = scmp.ne.s32.totalorder %s47, %s50
      %p56 = scmp.eq.s32.totalorder %s16, 0
      %p57 = por %p55, %p56
      %p58 = scmp.ne.s32.totalorder %s47, %s50
      %p59 = scmp.eq.s32.totalorder %s21, 1
      %p60 = por %p58, %p59
      %p61 = scmp.ne.s32.totalorder %s50, %s51
      %p62 = scmp.eq.s32.totalorder %s21, 0
      %p63 = por %p61, %p62
      %p64 = scmp.ne.s32.totalorder %s50, %s51
      %p65 = scmp.eq.s32.totalorder %s22, 1
      %p66 = por %p64, %p65
      %p68 = scmp.ne.s32.totalorder %s51, %s67
      %p69 = scmp.eq.s32.totalorder %s22, 0
      %p70 = por %p68, %p69
      %s72 = sadd.s32 %s71, 1
      %p75 = scmp.eq.s32.totalorder %s16, 1
      %p76 = scmp.ne.s32.totalorder %s71, %s73
      %p77 = scmp.eq.s32.totalorder %s16, 0
      %p78 = por %p76, %p77
      %p79 = scmp.ne.s32.totalorder %s71, %s73
      %p80 = scmp.eq.s32.totalorder %s21, 1
      %p81 = por %p79, %p80
      %p82 = scmp.ne.s32.totalorder %s73, %s74
      %p83 = scmp.eq.s32.totalorder %s21, 0
      %p84 = por %p82, %p83
      %p85 = scmp.ne.s32.totalorder %s73, %s74
      %p86 = scmp.eq.s32.totalorder %s22, 1
      %p87 = por %p85, %p86
      %p89 = scmp.ne.s32.totalorder %s74, %s88
      %p90 = scmp.eq.s32.totalorder %s22, 0
      %p91 = por %p89, %p90
      %s93 = sadd.s32 %s92, 1
      %p96 = scmp.eq.s32.totalorder %s16, 1
      %p97 = scmp.ne.s32.totalorder %s92, %s94
      %p98 = scmp.eq.s32.totalorder %s16, 0
      %p99 = por %p97, %p98
      %p100 = scmp.ne.s32.totalorder %s92, %s94
      %p101 = scmp.eq.s32.totalorder %s21, 1
      %p102 = por %p100, %p101
      %p103 = scmp.ne.s32.totalorder %s94, %s95
      %p104 = scmp.eq.s32.totalorder %s21, 0
      %p105 = por %p103, %p104
      %p106 = scmp.ne.s32.totalorder %s94, %s95
      %p107 = scmp.eq.s32.totalorder %s22, 1
      %p108 = por %p106, %p107
      %p110 = scmp.ne.s32.totalorder %s95, %s109
      %p111 = scmp.eq.s32.totalorder %s22, 0
      %p112 = por %p110, %p111
      %s113 = ssub.s32 %s16, %s23
      %p114 = scmp.eq.s32.totalorder %s113, 0
      %s116 = sadd.s32 %s115, 1
      %s117 = scalar_select %p114, %s115, %s116
      %p120 = pneg %p114
      %p121 = scmp.eq.s32.totalorder %s16, 1
      %p122 = por %p120, %p121
      %p123 = scmp.ne.s32.totalorder %s115, %s118
      %p124 = scmp.eq.s32.totalorder %s16, 0
      %p125 = por %p123, %p124
      %p126 = scmp.ne.s32.totalorder %s115, %s118
      %p127 = scmp.eq.s32.totalorder %s21, 1
      %p128 = por %p126, %p127
      %p129 = scmp.ne.s32.totalorder %s118, %s119
      %p130 = scmp.eq.s32.totalorder %s21, 0
      %p131 = por %p129, %p130
      %p132 = scmp.ne.s32.totalorder %s118, %s119
      %p133 = scmp.eq.s32.totalorder %s22, 1
      %p134 = por %p132, %p133
      %p136 = scmp.ne.s32.totalorder %s119, %s135
      %p137 = scmp.eq.s32.totalorder %s22, 0
      %p138 = por %p136, %p137
      %p139 = scmp.le.s32.totalorder 1, %s16
      %p140 = scmp.lt.s32.totalorder %s16, 3
      %p141 = pnand %p139, %p140
      %p142 = pneg %p141
      // Predicated region
      $region9: #{tpu_custom_call.1} parent=5 // pred_check
        _
      $region10: #{tpu_custom_call.1} parent=5 // pred_check_branch
        %144 = sbr.rel (%p141) target = $region12
      $region11: #{tpu_custom_call.1} parent=5 // pred_region
        %s145 = ssub.s32 %s16, 1
        // Predicated region
        $region13: #{tpu_custom_call.1} parent=11 // pred_check
          %p146 = pneg %p37
        $region14: #{tpu_custom_call.1} parent=11 // pred_check_branch
          %148 = sbr.rel (%p146) target = $region16
        $region15: #{tpu_custom_call.1} parent=11 // pred_region
          _
        $region16: #{tpu_custom_call.1} parent=11 // pred_fallthru
          _
        // Predicated region
        $region17: #{tpu_custom_call.1} parent=11 // pred_check
          %p149 = pneg %p84
        $region18: #{tpu_custom_call.1} parent=11 // pred_check_branch
          %151 = sbr.rel (%p149) target = $region20
        $region19: #{tpu_custom_call.1} parent=11 // pred_region
          _
        $region20: #{tpu_custom_call.1} parent=11 // pred_fallthru
          _
        // Predicated region
        $region21: #{tpu_custom_call.1} parent=11 // pred_check
          %p152 = pneg %p105
        $region22: #{tpu_custom_call.1} parent=11 // pred_check_branch
          %154 = sbr.rel (%p152) target = $region24
        $region23: #{tpu_custom_call.1} parent=11 // pred_region
          _
        $region24: #{tpu_custom_call.1} parent=11 // pred_fallthru
          _
      $region12: #{tpu_custom_call.1} parent=5 // pred_fallthru
        _
      %p155 = scmp.lt.s32.totalorder %s16, 2
      // Predicated region
      $region25: #{tpu_custom_call.1} parent=5 // pred_check
        %p156 = pneg %p155
      $region26: #{tpu_custom_call.1} parent=5 // pred_check_branch
        %158 = sbr.rel (%p156) target = $region28
      $region27: #{tpu_custom_call.1} parent=5 // pred_region
        // Predicated region
        $region29: #{tpu_custom_call.1} parent=27 // pred_check
          %p159 = pneg %p57
        $region30: #{tpu_custom_call.1} parent=27 // pred_check_branch
          %161 = sbr.rel (%p159) target = $region32
        $region31: #{tpu_custom_call.1} parent=27 // pred_region
          %s162 = sand.u32 %s47, 1
          %s163 = scalar_lea.sflag [#allocation3], %s162
          %s164 = sand.u32 %s47, 1
          %s165 = smul.addr %s164, 40
          %s166 = scalar_lea.vmem [#allocation2], %s165
          %s167 = smul.u32 2, %s16
          %169 = vsyncadd %s163, 0
          %s170 = smul.addr %s167, 4
          %s171 = scalar_lea.hbm %s1, %s170
          %s172 = sshll.u32 %s171, 4
          %s173 = int_to_ptr.hbm [resolvable:$true] %s172
          %s174 = sshll.u32 %s166, 4
          %s175 = int_to_ptr.vmem [resolvable:$true] %s174
          %180 = dma.hbm_to_vmem [thread:$0]  %s173, 640, %s175, %s163, 256, 128, 8
        $region32: #{tpu_custom_call.1} parent=27 // pred_fallthru
          _
      $region28: #{tpu_custom_call.1} parent=5 // pred_fallthru
        _
      %p181 = scmp.le.s32.totalorder 1, %s16
      %p182 = scmp.lt.s32.totalorder %s16, 3
      %p183 = pnand %p181, %p182
      %p184 = pneg %p183
      // Predicated region
      $region33: #{tpu_custom_call.1} parent=5 // pred_check
        _
      $region34: #{tpu_custom_call.1} parent=5 // pred_check_branch
        %186 = sbr.rel (%p183) target = $region36
      $region35: #{tpu_custom_call.1} parent=5 // pred_region
        %s187 = ssub.s32 %s16, 1
        %s188 = sand.u32 %s50, 1
        %s189 = scalar_lea.sflag [#allocation3], %s188
        %s190 = sand.u32 %s50, 1
        %s191 = smul.addr %s190, 40
        %s192 = scalar_lea.vmem [#allocation2], %s191
        // Predicated region
        $region37: #{tpu_custom_call.1} parent=35 // pred_check
          %p193 = pneg %p63
        $region38: #{tpu_custom_call.1} parent=35 // pred_check_branch
          %195 = sbr.rel (%p193) target = $region40
        $region39: #{tpu_custom_call.1} parent=35 // pred_region
          %197 = dma.done %s189, 640
        $region40: #{tpu_custom_call.1} parent=35 // pred_fallthru
          _
        %p198 = pneg %p37
        %p199 = pneg %p34
        %s200 = sand.u32 %s50, 1
        %s201 = scalar_lea.sflag [#allocation3], %s200
        %s202 = sand.u32 %s50, 1
        %s203 = smul.addr %s202, 40
        %s204 = scalar_lea.vmem [#allocation2], %s203
        %p205 = pneg %p63
        %p206 = pneg %p60
        %p207 = pneg %p84
        %p208 = pneg %p81
        %p209 = pneg %p105
        %p210 = pneg %p102
        %p211 = pneg %p131
        %p212 = pneg %p128
        %s213 = sand.u32 %s118, 1
        %s214 = scalar_lea.sflag [#allocation4], %s213
        %s215 = sand.u32 %s118, 1
        %s216 = smul.addr %s215, 16
        %s217 = scalar_lea.vmem [#allocation5], %s216
        %s218 = smul.u32 2, %s21
        %s219 = smul.u32 2, %s21
        %v221 = vld [vmem:[%s0] sm:$0xf]
        %v222 = vld [vmem:[%s192] sm:$0xff]
        %v223 = vld [vmem:[%s192 + $0x8] sm:$0xff]
        %v224 = vld [vmem:[%s192 + $0x10] sm:$0xff]
        %v225 = vld [vmem:[%s192 + $0x18] sm:$0xff]
        %v226 = vld [vmem:[%s192 + $0x20] sm:$0x33]
        %v232 = vunpack.c.l.b16 %v222
        %v233 = vunpack.c.h.b16 %v222
        %v234 = vunpack.c.l.b16 %v223
        %v235 = vunpack.c.h.b16 %v223
        %v236 = vunpack.c.l.b16 %v224
        %v237 = vunpack.c.h.b16 %v224
        %v238 = vunpack.c.l.b16 %v225
        %v239 = vunpack.c.h.b16 %v225
        %v240 = vunpack.c.l.b16 %v226
        %v241 = vunpack.c.h.b16 %v226
        %v242 = vpack.c.b16 %v234, %v232
        %v243 = vpack.c.b16 %v235, %v233
        %v244 = vpack.c.b16 %v238, %v236
        %v245 = vpack.c.b16 %v239, %v237
        %v246 = vpack.c.b16 %v240, %v240
        %v247 = vpack.c.b16 %v241, %v241
        %vm252 = vcmask 293888
        %v254 = vsel %vm252, %v221, 0
        %vm256 = vcmask 1041408
        %v258 = vsel %vm256, %v246, 0
        %v261 = vsel %vm256, %v247, 0
        %263 = vmatpush.bf16.msra.mxu0 0
        %264 = vmatpush.bf16.msra.mxu0 0
        %265 = vmatpush.bf16.msra.mxu0 0
        %266 = vmatpush.bf16.msra.mxu0 0
        %267 = vmatpush.bf16.msra.mxu0 0
        %268 = vmatpush.bf16.msra.mxu0 %v258
        %269 = vmatpush.bf16.msra.mxu0 %v244
        %270 = vmatpush.bf16.msra.mxu0 %v242
        %271 = vmatmul.bf16.gmra.mxu0 %v254
        %v272 = vpop.f32.mrf.mxu0
        %v273 = vadd.f32 0.0, %v272
        %v274 = vpop.f32.mrf.mxu0
        %275 = vdwg.mxu0
        %276 = vmatpush.bf16.msra.mxu0 0
        %277 = vmatpush.bf16.msra.mxu0 0
        %278 = vmatpush.bf16.msra.mxu0 0
        %279 = vmatpush.bf16.msra.mxu0 0
        %280 = vmatpush.bf16.msra.mxu0 0
        %281 = vmatpush.bf16.msra.mxu0 %v261
        %282 = vmatpush.bf16.msra.mxu0 %v245
        %283 = vmatpush.bf16.msra.mxu0 %v243
        %284 = vmatmul.bf16.gmra.mxu0 %v254
        %v285 = vpop.f32.mrf.mxu0
        %v286 = vadd.f32 0.0, %v285
        %v287 = vpop.f32.mrf.mxu0
        %288 = vdwg.mxu0
        %v289 = vld [vmem:[%s2] sm:$0xff]
        %291 = vset.pattern.permute.xlu0 0
        %292 = vperm.xlu0 %291, %v289
        %v293 = vpop.permute.xlu0 %292
        %v295 = vmul.f32 %v273, %v293
        %v296 = vmul.f32 %v286, %v293
        %v297 = vld [vmem:[%s3] sm:$0xff]
        %299 = vset.pattern.permute.xlu0 0
        %300 = vperm.xlu0 %299, %v297
        %v301 = vpop.permute.xlu0 %300
        %v303 = vadd.f32 %v295, %v301
        %v304 = vadd.f32 %v296, %v301
        %vm305 = vcmp.gt.f32.partialorder %v303, 0.0
        %vm306 = vcmp.gt.f32.partialorder %v304, 0.0
        %v307 = vmul.f32 %v303, 0.01
        %v308 = vmul.f32 %v304, 0.01
        %v309 = vsel %vm305, %v303, %v307
        %v310 = vsel %vm306, %v304, %v308
        %311 = vst [vmem:[%s217] sm:$0xff] %v309
        %312 = vst [vmem:[%s217 + $0x8] sm:$0xff] %v310
        %s313 = sand.u32 %s118, 1
        %s314 = scalar_lea.sflag [#allocation4], %s313
        %s315 = sand.u32 %s118, 1
        %s316 = smul.addr %s315, 16
        %s317 = scalar_lea.vmem [#allocation5], %s316
        // Predicated region
        $region41: #{tpu_custom_call.1} parent=35 // pred_check
          %p318 = pneg %p128
        $region42: #{tpu_custom_call.1} parent=35 // pred_check_branch
          %320 = sbr.rel (%p318) target = $region44
        $region43: #{tpu_custom_call.1} parent=35 // pred_region
          %s321 = smul.u32 2, %s21
          %323 = vsyncadd %s314, 0
          %s324 = smul.addr %s321, 8
          %s325 = scalar_lea.hbm %s4, %s324
          %s327 = sshll.u32 %s317, 4
          %s328 = int_to_ptr.vmem [resolvable:$true] %s327
          %s329 = sshll.u32 %s325, 4
          %s330 = int_to_ptr.hbm [resolvable:$true] %s329
          %332 = dma.vmem_to_hbm [thread:$0]  %s328, 256, %s330, %s314
        $region44: #{tpu_custom_call.1} parent=35 // pred_fallthru
          _
      $region36: #{tpu_custom_call.1} parent=5 // pred_fallthru
        _
      %p333 = scmp.le.s32.totalorder 2, %s16
      // Predicated region
      $region45: #{tpu_custom_call.1} parent=5 // pred_check
        %p334 = pneg %p333
      $region46: #{tpu_custom_call.1} parent=5 // pred_check_branch
        %336 = sbr.rel (%p334) target = $region48
      $region47: #{tpu_custom_call.1} parent=5 // pred_region
        %s337 = ssub.s32 %s16, 2
        // Predicated region
        $region49: #{tpu_custom_call.1} parent=47 // pred_check
          %p338 = pneg %p134
        $region50: #{tpu_custom_call.1} parent=47 // pred_check_branch
          %340 = sbr.rel (%p338) target = $region52
        $region51: #{tpu_custom_call.1} parent=47 // pred_region
          %s341 = sand.u32 %s119, 1
          %s342 = scalar_lea.sflag [#allocation4], %s341
          %s343 = sand.u32 %s119, 1
          %s344 = smul.addr %s343, 16
          %s345 = scalar_lea.vmem [#allocation5], %s344
          %347 = dma.done %s342, 256
        $region52: #{tpu_custom_call.1} parent=47 // pred_fallthru
          _
      $region48: #{tpu_custom_call.1} parent=5 // pred_fallthru
        _
    $region6: #{tpu_custom_call.1} parent=1 // loop_footer
      %s20 = sadd.s32 1, %s16
    $region7: #{tpu_custom_call.1} parent=1 // loop_footer_branch
      %15 = sbr.rel target = $region3
    $region8: #{tpu_custom_call.1} parent=1 // loop_exit
      _
    %348 = vsyncpa [#allocation3], 1
    %s349 = scalar_lea.sflag [#allocation3], 1
    %350 = vsyncpa %s349, 1
    %351 = vsyncpa [#allocation4], 1
    %s352 = scalar_lea.sflag [#allocation4], 1
    %353 = vsyncpa %s352, 1

</llo_original>
